<compile_context>
chip_gen: v6e
topology: v6e:2x2x1
jax: 0.10.0
libtpu: 0.0.40
codegen_flags: <defaults>
</compile_context>

<pallas_src>
import jax
import jax.numpy as jnp
from jax import lax
from jax.experimental import pallas as pl
from jax.experimental.pallas import tpu as pltpu


def _make_kernel(W, S):
    """Kernel for one (batch, row-block) grid step.

    Block refs:
      x_ref   : (1, S, C)      TH image rows, natural (L, C) layout
      brow_ref: (1, W, C)      first row of the *next* row block (halo)
      w_ref   : (4*4*Co, C)    per-view, phase-major repacked ConvT taps
      b_ref   : (4*Co, 1)      bias repeated over the 4 output phases
      o_ref   : (1, 4*Co, S)   the four output parity phases, lane-dense
    """
    # Zero rows appended after the halo row: keeps the shifted lane slices in
    # bounds and makes the projected lane count a multiple of 128.
    pad_rows = (-(S + W)) % 128
    if pad_rows == 0:
        pad_rows = 128

    def kernel(x_ref, brow_ref, w_ref, b_ref, o_ref):
        f32 = jnp.float32
        x = x_ref[0]                                   # (S, C)
        brow = brow_ref[0]                             # (W, C)
        C = x.shape[1]
        P = o_ref.shape[1]                             # 4 * Co phase rows

        # Below the bottom image row the halo is ConvT zero padding.
        halo_on = (pl.program_id(1) + 1 < pl.num_programs(1)).astype(x.dtype)
        brow = brow * halo_on

        # Append the halo row (sublane concat, 8-aligned boundaries).
        x_ext = jnp.concatenate(
            [x, brow, jnp.zeros((pad_rows, C), x.dtype)], axis=0)  # (SE, C)

        # Single channel contraction for all 4 views x 4 phases at once,
        # q @ k.T orientation so the spatial axis stays lane-dense:
        #   y[v*P + p, s] = sum_c Wv[p, c] * x_ext[s, c]
        dn = (((1,), (1,)), ((), ()))
        y = lax.dot_general(w_ref[...], x_ext, dn,
                            preferred_element_type=f32)            # (4P, SE)

        # The right neighbour does not exist in the last image column.
        lane = lax.broadcasted_iota(jnp.int32, (1, S), 1)
        keep = (lane % W != W - 1).astype(f32)

        # Spatial shifts commute with the channel contraction -> static
        # lane slices of the projection instead of shifted-input streams.
        acc = y[0 * P:1 * P, 0:S]                                   # x[m, n]
        acc = acc + y[1 * P:2 * P, 1:S + 1] * keep                  # x[m, n+1]
        acc = acc + y[2 * P:3 * P, W:S + W]                         # x[m+1, n]
        acc = acc + y[3 * P:4 * P, W + 1:S + W + 1] * keep          # x[m+1, n+1]

        o_ref[0] = (acc + b_ref[...]).astype(o_ref.dtype)

    return kernel


def _rows_per_block(H, W, C, Co, itemsize, batch, vmem_budget=32 << 20):
    """Largest TH dividing H with S = TH*W lane-aligned and the estimated
    *total* VMEM footprint (buffers + in-kernel temporaries) under budget."""
    c_pad = -(-C // 128) * 128
    per_elem = (
        3 * c_pad * itemsize        # 2x double-buffered (S, C) input + x_ext copy (lane-padded)
        + 2 * 4 * Co * itemsize     # double-buffered (4*Co, S) output block
        + (16 * Co + 12 * Co) * 4   # f32 projection y + live accumulator/slice temps
        + 8                         # lane mask
    )
    divs = [d for d in range(1, H + 1) if H % d == 0]
    aligned = [d for d in divs if (d * W) % 128 == 0]
    if not aligned:
        # TODO(synk): lane-misaligned fallback (whole image per step); correct
        # but uses masked stores.
        return H
    fits = [d for d in aligned if d * W * per_elem <= vmem_budget]
    if not fits:
        return min(aligned)
    multi = [d for d in fits if batch * (H // d) >= 2]   # keep both v7x cores busy
    return max(multi) if multi else max(fits)


def patch_inflated_forward(x, weight, bias, input_resolution):
    """x: (B, L, C); weight: (embed_dim, in_chans, 3, 3); bias: (in_chans,).

    Returns NCHW output (B, in_chans, 2H, 2W) matching PyTorch
    ConvTranspose2d(stride=2, padding=1, output_padding=1).
    """
    H, W = input_resolution
    B, L, C = x.shape
    assert L == H * W, "input feature has wrong size"
    assert H % 2 == 0 and W % 2 == 0, f"x size ({H}*{W}) are not even."
    Ci, Co, KH, KW = weight.shape
    assert Ci == C and KH == 3 and KW == 3
    dt = x.dtype

    # ---- tiny weight / bias repacking (plain JAX, done once) --------------
    # ConvT taps for output pixel (2m+a, 2n+b), phase p = 2a+b:
    #   p00 = W11 x            ; p01 = W12 x + W10 x_r
    #   p10 = W21 x + W01 x_d  ; p11 = W22 x + W20 x_r + W02 x_d + W00 x_dr
    # (x_r = x[m,n+1], x_d = x[m+1,n], x_dr = x[m+1,n+1]; Wij = weight[:,:,i,j]^T)
    wT = jnp.transpose(weight, (2, 3, 1, 0)).astype(dt)    # (kh, kw, Co, Ci)
    Z = jnp.zeros((Co, Ci), dt)
    wv0 = jnp.concatenate([wT[1, 1], wT[1, 2], wT[2, 1], wT[2, 2]], axis=0)
    wv1 = jnp.concatenate([Z,        wT[1, 0], Z,        wT[2, 0]], axis=0)
    wv2 = jnp.concatenate([Z,        Z,        wT[0, 1], wT[0, 2]], axis=0)
    wv3 = jnp.concatenate([Z,        Z,        Z,        wT[0, 0]], axis=0)
    w_cat = jnp.concatenate([wv0, wv1, wv2, wv3], axis=0)  # (4*4*Co, Ci)
    b_rep = jnp.tile(bias.astype(jnp.float32), 4).reshape(4 * Co, 1)

    TH = _rows_per_block(H, W, C, Co, jnp.dtype(dt).itemsize, B)
    n_blk = H // TH
    S = TH * W

    kernel = _make_kernel(W, S)

    out_phases = pl.pallas_call(
        kernel,
        out_shape=jax.ShapeDtypeStruct((B, 4 * Co, H * W), dt),
        grid_spec=pltpu.PrefetchScalarGridSpec(
            num_scalar_prefetch=0,
            grid=(B, n_blk),
            in_specs=[
                # main stream: TH rows in natural (L, C) layout (no wrapper transpose)
                pl.BlockSpec((1, S, C), lambda b, i: (b, i, 0)),
                # halo: first row of the next block, re-read from x itself
                # (clamped at the last block; zeroed in-kernel there)
                pl.BlockSpec((1, W, C),
                             lambda b, i: (b, jnp.minimum((i + 1) * TH, H - 1), 0)),
                pl.BlockSpec((4 * 4 * Co, C), lambda b, i: (0, 0)),
                pl.BlockSpec((4 * Co, 1), lambda b, i: (0, 0)),
            ],
            out_specs=pl.BlockSpec((1, 4 * Co, S), lambda b, i: (b, 0, i)),
        ),
        compiler_params=pltpu.CompilerParams(
            dimension_semantics=("parallel", "parallel"),
            vmem_limit_bytes=48 * 1024 * 1024,
        ),
    )(x, x, w_cat, b_rep)

    # Phase interleave back to NCHW (output-sized reshape/transpose only):
    # rows are p*Co + co with p = 2a + b  ->  out[b, co, 2m+a, 2n+b].
    out = out_phases.reshape(B, 2, 2, Co, H, W)
    out = jnp.transpose(out, (0, 3, 4, 1, 5, 2))
    return out.reshape(B, Co, 2 * H, 2 * W)


if __name__ == "__main__":
    import numpy as np

    B, H, W = 2, 16, 16
    embed_dim, in_chans = 32, 4

    key = jax.random.PRNGKey(0)
    k1, k2, k3 = jax.random.split(key, 3)
    x = jax.random.normal(k1, (B, H * W, embed_dim), dtype=jnp.float32)
    weight = jax.random.normal(k2, (embed_dim, in_chans, 3, 3),
                               dtype=jnp.float32) * 0.1
    bias = jax.random.normal(k3, (in_chans,), dtype=jnp.float32) * 0.1

    fwd = jax.jit(lambda a, w, b: patch_inflated_forward(a, w, b, (H, W)))
    out = jax.block_until_ready(fwd(x, weight, bias))

    # ---- independent NumPy reference (direct ConvTranspose2d definition) ----
    xn = np.asarray(x).reshape(B, H, W, embed_dim).transpose(0, 3, 1, 2)
    wn = np.asarray(weight)
    bn = np.asarray(bias)
    OH, OW = 2 * H, 2 * W
    ref = np.zeros((B, in_chans, OH, OW), np.float32)
    for kh in range(3):
        for kw in range(3):
            contrib = np.einsum("bchw,cd->bdhw", xn, wn[:, :, kh, kw])
            for ih in range(H):
                oh = ih * 2 - 1 + kh
                if not (0 <= oh < OH):
                    continue
                for iw in range(W):
                    ow = iw * 2 - 1 + kw
                    if not (0 <= ow < OW):
                        continue
                    ref[:, :, oh, ow] += contrib[:, :, ih, iw]
    ref += bn[None, :, None, None]

    assert out.shape == (B, in_chans, OH, OW)
    np.testing.assert_allclose(np.asarray(out), ref, rtol=5e-4, atol=5e-4)
    print("KERNEL_OK")
</pallas_src>

<mosaic_0001>
module attributes {stable_mosaic.version = 11 : i64} {
  func.func @kernel(%arg0: i32, %arg1: i32, %arg2: memref<1x256x32xf32, #tpu.memory_space<vmem>>, %arg3: memref<1x16x32xf32, #tpu.memory_space<vmem>>, %arg4: memref<64x32xf32, #tpu.memory_space<vmem>>, %arg5: memref<16x1xf32, #tpu.memory_space<vmem>>, %arg6: memref<1x16x256xf32, #tpu.memory_space<vmem>>) attributes {dimension_semantics = [#tpu.dimension_semantics<parallel>, #tpu.dimension_semantics<parallel>], iteration_bounds = array<i64: 2, 1>, scalar_prefetch = 0 : i64, scratch_operands = 0 : i64, tpu.core_type = #tpu.core_type<tc>, window_params = [{transform_indices = @transform_0, window_bounds = array<i64: 1, 256, 32>}, {transform_indices = @transform_1, window_bounds = array<i64: 1, 16, 32>}, {pipeline_mode = #tpu.pipeline_mode<synchronous>, transform_indices = @transform_2, window_bounds = array<i64: 64, 32>}, {pipeline_mode = #tpu.pipeline_mode<synchronous>, transform_indices = @transform_3, window_bounds = array<i64: 16, 1>}, {transform_indices = @transform_4, window_bounds = array<i64: 1, 16, 256>}]} {
    %c0 = arith.constant 0 : index
    %c0_0 = arith.constant 0 : index
    %c0_1 = arith.constant 0 : index
    %0 = vector.load %arg2[%c0, %c0_0, %c0_1] : memref<1x256x32xf32, #tpu.memory_space<vmem>>, vector<1x256x32xf32>
    %1 = vector.shape_cast %0 : vector<1x256x32xf32> to vector<256x32xf32>
    %c0_2 = arith.constant 0 : index
    %c0_3 = arith.constant 0 : index
    %c0_4 = arith.constant 0 : index
    %2 = vector.load %arg3[%c0_2, %c0_3, %c0_4] : memref<1x16x32xf32, #tpu.memory_space<vmem>>, vector<1x16x32xf32>
    %3 = vector.shape_cast %2 : vector<1x16x32xf32> to vector<16x32xf32>
    %c1_i32 = arith.constant 1 : i32
    %4 = arith.addi %arg1, %c1_i32 : i32
    %c1_i32_5 = arith.constant 1 : i32
    %5 = arith.cmpi slt, %4, %c1_i32_5 : i32
    %6 = arith.extui %5 : i1 to i32
    %7 = arith.sitofp %6 : i32 to f32
    %8 = vector.broadcast %7 : f32 to vector<16x32xf32>
    %9 = arith.mulf %3, %8 : vector<16x32xf32>
    %cst = arith.constant 0.000000e+00 : f32
    %10 = vector.broadcast %cst : f32 to vector<112x32xf32>
    %11 = tpu.concatenate %1, %9, %10 in 0 : vector<256x32xf32>, vector<16x32xf32>, vector<112x32xf32> -> vector<384x32xf32>
    %c0_6 = arith.constant 0 : index
    %c0_7 = arith.constant 0 : index
    %12 = vector.load %arg4[%c0_6, %c0_7] : memref<64x32xf32, #tpu.memory_space<vmem>>, vector<64x32xf32>
    %cst_8 = arith.constant dense<0.000000e+00> : vector<64x384xf32>
    %13 = tpu.matmul %12, %11, %cst_8 {dimension_numbers = #tpu.dot_dimension_numbers<[1], [1], [0], [0], [0, 0, 1, 0], [], []>} : vector<64x32xf32>, vector<384x32xf32>, vector<64x384xf32> -> vector<64x384xf32>
    %14 = tpu.iota {dimensions = array<i32: 1>} : vector<1x256xi32>
    %c16_i32 = arith.constant 16 : i32
    %c0_i32 = arith.constant 0 : i32
    %15 = arith.cmpi eq, %c16_i32, %c0_i32 : i32
    %c1_i32_9 = arith.constant 1 : i32
    %16 = arith.select %15, %c1_i32_9, %c16_i32 : i32
    %17 = vector.broadcast %16 : i32 to vector<1x256xi32>
    %18 = arith.remsi %14, %17 : vector<1x256xi32>
    %c0_i32_10 = arith.constant 0 : i32
    %19 = vector.broadcast %c0_i32_10 : i32 to vector<1x256xi32>
    %20 = arith.cmpi ne, %18, %19 : vector<1x256xi32>
    %c0_i32_11 = arith.constant 0 : i32
    %21 = vector.broadcast %c0_i32_11 : i32 to vector<1x256xi32>
    %22 = arith.cmpi slt, %18, %21 : vector<1x256xi32>
    %c0_i32_12 = arith.constant 0 : i32
    %23 = arith.cmpi slt, %16, %c0_i32_12 : i32
    %24 = vector.broadcast %23 : i1 to vector<1x256xi1>
    %25 = vector.broadcast %24 : vector<1x256xi1> to vector<1x256xi1>
    %26 = arith.xori %22, %25 : vector<1x256xi1>
    %27 = arith.andi %26, %20 : vector<1x256xi1>
    %28 = vector.broadcast %16 : i32 to vector<1x256xi32>
    %29 = arith.addi %18, %28 : vector<1x256xi32>
    %30 = arith.select %27, %29, %18 : vector<1x256xi1>, vector<1x256xi32>
    %c15_i32 = arith.constant 15 : i32
    %31 = vector.broadcast %c15_i32 : i32 to vector<1x256xi32>
    %32 = arith.cmpi ne, %30, %31 : vector<1x256xi32>
    %33 = arith.extui %32 : vector<1x256xi1> to vector<1x256xi32>
    %34 = arith.sitofp %33 : vector<1x256xi32> to vector<1x256xf32>
    %35 = vector.extract_strided_slice %13 {offsets = [0, 0], sizes = [16, 256], strides = [1, 1]} : vector<64x384xf32> to vector<16x256xf32>
    %36 = vector.extract_strided_slice %13 {offsets = [16, 1], sizes = [16, 256], strides = [1, 1]} : vector<64x384xf32> to vector<16x256xf32>
    %37 = vector.broadcast %34 : vector<1x256xf32> to vector<16x256xf32>
    %38 = arith.mulf %36, %37 : vector<16x256xf32>
    %39 = arith.addf %35, %38 : vector<16x256xf32>
    %40 = vector.extract_strided_slice %13 {offsets = [32, 16], sizes = [16, 256], strides = [1, 1]} : vector<64x384xf32> to vector<16x256xf32>
    %41 = arith.addf %39, %40 : vector<16x256xf32>
    %42 = vector.extract_strided_slice %13 {offsets = [48, 17], sizes = [16, 256], strides = [1, 1]} : vector<64x384xf32> to vector<16x256xf32>
    %43 = vector.broadcast %34 : vector<1x256xf32> to vector<16x256xf32>
    %44 = arith.mulf %42, %43 : vector<16x256xf32>
    %45 = arith.addf %41, %44 : vector<16x256xf32>
    %c0_13 = arith.constant 0 : index
    %c0_14 = arith.constant 0 : index
    %46 = vector.load %arg5[%c0_13, %c0_14] : memref<16x1xf32, #tpu.memory_space<vmem>>, vector<16x1xf32>
    %47 = vector.broadcast %46 : vector<16x1xf32> to vector<16x256xf32>
    %48 = arith.addf %45, %47 : vector<16x256xf32>
    %c0_15 = arith.constant 0 : index
    %c0_16 = arith.constant 0 : index
    %c0_17 = arith.constant 0 : index
    %49 = vector.load %arg6[%c0_15, %c0_16, %c0_17] : memref<1x16x256xf32, #tpu.memory_space<vmem>>, vector<1x16x256xf32>
    %50 = vector.shape_cast %49 : vector<1x16x256xf32> to vector<16x256xf32>
    %51 = vector.shape_cast %48 : vector<16x256xf32> to vector<1x16x256xf32>
    tpu.vector_store %arg6[%c0_15, %c0_16, %c0_17], %51 {strides = array<i32>} : memref<1x16x256xf32, #tpu.memory_space<vmem>>, vector<1x16x256xf32>,
    return
  }
  func.func @transform_0(%arg0: i32, %arg1: i32) -> (i32, i32, i32) {
    %c0_i32 = arith.constant 0 : i32
    %c0_i32_0 = arith.constant 0 : i32
    return %arg0, %arg1, %c0_i32 : i32, i32, i32
  }
  func.func @transform_1(%arg0: i32, %arg1: i32) -> (i32, i32, i32) {
    %c1_i32 = arith.constant 1 : i32
    %0 = arith.addi %arg1, %c1_i32 : i32
    %c16_i32 = arith.constant 16 : i32
    %1 = arith.muli %0, %c16_i32 : i32
    %c15_i32 = arith.constant 15 : i32
    %2 = arith.minsi %1, %c15_i32 : i32
    %c0_i32 = arith.constant 0 : i32
    %c0_i32_0 = arith.constant 0 : i32
    return %arg0, %2, %c0_i32 : i32, i32, i32
  }
  func.func @transform_2(%arg0: i32, %arg1: i32) -> (i32, i32) {
    %c0_i32 = arith.constant 0 : i32
    %c0_i32_0 = arith.constant 0 : i32
    %c0_i32_1 = arith.constant 0 : i32
    return %c0_i32, %c0_i32_0 : i32, i32
  }
  func.func @transform_3(%arg0: i32, %arg1: i32) -> (i32, i32) {
    %c0_i32 = arith.constant 0 : i32
    %c0_i32_0 = arith.constant 0 : i32
    %c0_i32_1 = arith.constant 0 : i32
    return %c0_i32, %c0_i32_0 : i32, i32
  }
  func.func @transform_4(%arg0: i32, %arg1: i32) -> (i32, i32, i32) {
    %c0_i32 = arith.constant 0 : i32
    %c0_i32_0 = arith.constant 0 : i32
    return %arg0, %c0_i32, %arg1 : i32, i32, i32
  }
}

</mosaic_0001>

<llo_original>
// kernel: tile.8
$region0: #{tile.8}
  #allocation0 [shape = 's32[1]{0}', space=sflag, size = 0x4, scoped, tag = 'scoped memory for tile.8']
  %s0 = inlined_call_operand.vmem [shape: f32[4], index: 0, kind: input, shape index: {}]
  %s1 = inlined_call_operand.vmem [shape: f32[4,4], index: 1, kind: output, shape index: {}]
  // Predicated region
  $region2: #{tile.8} parent=0 // pred_check
    _
  $region3: #{tile.8} parent=0 // pred_check_branch
    %3 = sbr.rel (0) target = $region5
  $region4: #{tile.8} parent=0 // pred_region
    _
  $region5: #{tile.8} parent=0 // pred_fallthru
    _
  %v4 = vld [vmem:[%s0] ss:$0 sm:$0xff]
  %5 = vst [vmem:[%s1] sm:$0xf] %v4

// kernel: tile.0
$region0: #{tile.0}
  %s0 = inlined_call_operand.vmem [shape: f32[4,4], index: 0, kind: input, shape index: {}]
  %s1 = inlined_call_operand.vmem [shape: f32[16,1], index: 1, kind: output, shape index: {}]
  $region1: #{tile.0} parent=0
    #allocation0 [shape = 'u8[4096]{0}', space=vmem, size = 0x1000, scoped, tag = 'scoped mem for input reshape']
    %s3 = sshll.u32 1, 4
    %s4 = ssub.s32 %s3, 1
    %v5 = vld [vmem:[%s0] sm:%s4]
    %6 = vst [vmem:[#allocation0] sm:%s4] %v5
    %v7 = vld [vmem:[#allocation0] sm:$0xf]
    %vm8 = vcmask 7168
    %9 = vst.msk [vmem:[%s1] ss:$4 sm:$0xf] %vm8, %v7
    %v10 = vld [vmem:[#allocation0] sm:$0xf]
    %11 = vrot.lane.b32.xlu0 %v10, 127
    %v12 = vpop.permute.xlu0 %11
    %vm13 = vcmask 7168
    %s14 = scalar_lea.vmem %s1, 1
    %15 = vst.msk [vmem:[%s14] ss:$4 sm:$0xf] %vm13, %v12
    %v16 = vld [vmem:[#allocation0] sm:$0xf]
    %17 = vrot.lane.b32.xlu0 %v16, 126
    %v18 = vpop.permute.xlu0 %17
    %vm19 = vcmask 7168
    %s20 = scalar_lea.vmem %s1, 2
    %21 = vst.msk [vmem:[%s20] ss:$4 sm:$0xf] %vm19, %v18
    %v22 = vld [vmem:[#allocation0] sm:$0xf]
    %23 = vrot.lane.b32.xlu0 %v22, 125
    %v24 = vpop.permute.xlu0 %23
    %vm25 = vcmask 7168
    %s26 = scalar_lea.vmem %s1, 3
    %27 = vst.msk [vmem:[%s26] ss:$4 sm:$0xf] %vm25, %v24

// kernel: _lambda_.1
$region0: #{_lambda_.1}
  #allocation0 [shape = 'u32[]', space=smem, size = 0x4, offset = 0x4, fixed_abs, tag = 'smem constant byte address 0x4 - core index']
  #allocation1 [shape = 'u32[144,128]{1,0:T(1,128)}', space=vmem, size = 0x12000, scoped, tag = 'internal scratch']
  %s0 = inlined_call_operand.vmem [shape: f32[2,256,32], index: 0, kind: input, shape index: {}, may-alias: {0,1}]
  %s1 = inlined_call_operand.vmem [shape: f32[2,256,32], index: 1, kind: input, shape index: {}, may-alias: {0,1}]
  %s2 = inlined_call_operand.vmem [shape: f32[64,32], index: 2, kind: input, shape index: {}]
  %s3 = inlined_call_operand.vmem [shape: f32[16,1], index: 3, kind: input, shape index: {}]
  %s4 = inlined_call_operand.vmem [shape: f32[2,16,256], index: 4, kind: output, shape index: {}]
  %s5 = sld [smem:[#allocation0]]
  $region49: #{_lambda_.1} parent=0
    _
  %s7 = ssub.s32 1, %s5
  %s8 = scalar_select 0, %s7, %s5
  loop: start=0, step=1, limit=4
  $region2: #{_lambda_.1} parent=0 // loop_pre_header
    _
  $region3: #{_lambda_.1} parent=0 // loop_header
    %s10 = sphi 0, %s14
    %p11 = scmp.ge.s32.totalorder %s10, 4
    %s17 = sphi 0, %s29
    %s18 = sphi 0, %s25
    %s19 = sphi 0, %s17
    %s20 = sphi 0, %s18
    %s21 = sphi 0, %s19
    %s22 = sphi 0, %s20
    %s34 = sphi 0, %s36
    %s37 = sphi 0, %s34
    %s38 = sphi 0, %s37
    %s54 = sphi 0, %s38
    %s70 = sphi 0, %s72
    %s73 = sphi 0, %s70
    %s74 = sphi 0, %s73
    %s90 = sphi 0, %s74
    %s94 = sphi 0, %s94
    %s96 = sphi 0, %s94
    %s97 = sphi 0, %s96
    %s111 = sphi 0, %s97
    %s115 = sphi 0, %s115
    %s117 = sphi 0, %s115
    %s118 = sphi 0, %s117
    %s132 = sphi 0, %s118
    %s140 = sphi 0, %s142
    %s143 = sphi 0, %s140
    %s144 = sphi 0, %s143
    %s160 = sphi 0, %s144
  $region4: #{_lambda_.1} parent=0 // loop_header_branch
    %13 = sbr.rel (%p11) target = $region8
  $region5: #{_lambda_.1} parent=0 // loop_body
    %s15 = ssub.s32 %s10, 1
    %s16 = ssub.s32 %s10, 2
    %s23 = sadd.s32 1, %s18
    %p24 = scmp.ge.s32.totalorder %s23, 1
    %s25 = scalar_select %p24, 0, %s23
    %s26 = sadd.s32 1, %s17
    %s27 = scalar_select %p24, %s26, %s17
    %p28 = scmp.ge.s32.totalorder %s27, 2
    %s29 = scalar_select %p28, 0, %s27
    %s30 = ssub.s32 %s17, %s29
    %s31 = ssub.s32 %s18, %s25
    %s32 = sor.u32 %s30, %s31
    %p33 = scmp.eq.s32.totalorder %s32, 0
    %s35 = sadd.s32 %s34, 1
    %s36 = scalar_select %p33, %s34, %s35
    %p39 = pneg %p33
    %p40 = scmp.eq.s32.totalorder %s10, 1
    %p41 = por %p39, %p40
    %p42 = scmp.ne.s32.totalorder %s34, %s37
    %p43 = scmp.eq.s32.totalorder %s10, 0
    %p44 = por %p42, %p43
    %p45 = scmp.ne.s32.totalorder %s34, %s37
    %p46 = scmp.eq.s32.totalorder %s15, 1
    %p47 = por %p45, %p46
    %p48 = scmp.ne.s32.totalorder %s37, %s38
    %p49 = scmp.eq.s32.totalorder %s15, 0
    %p50 = por %p48, %p49
    %p51 = scmp.ne.s32.totalorder %s37, %s38
    %p52 = scmp.eq.s32.totalorder %s16, 1
    %p53 = por %p51, %p52
    %p55 = scmp.ne.s32.totalorder %s38, %s54
    %p56 = scmp.eq.s32.totalorder %s16, 0
    %p57 = por %p55, %p56
    %s58 = sadd.s32 %s18, 1
    %s59 = smul.u32 %s58, 16
    %p60 = scmp.lt.s32.totalorder %s59, 15
    %s61 = scalar_select %p60, %s59, 15
    %s62 = sadd.s32 %s25, 1
    %s63 = smul.u32 %s62, 16
    %p64 = scmp.lt.s32.totalorder %s63, 15
    %s65 = scalar_select %p64, %s63, 15
    %s66 = ssub.s32 %s17, %s29
    %s67 = ssub.s32 %s61, %s65
    %s68 = sor.u32 %s66, %s67
    %p69 = scmp.eq.s32.totalorder %s68, 0
    %s71 = sadd.s32 %s70, 1
    %s72 = scalar_select %p69, %s70, %s71
    %p75 = pneg %p69
    %p76 = scmp.eq.s32.totalorder %s10, 1
    %p77 = por %p75, %p76
    %p78 = scmp.ne.s32.totalorder %s70, %s73
    %p79 = scmp.eq.s32.totalorder %s10, 0
    %p80 = por %p78, %p79
    %p81 = scmp.ne.s32.totalorder %s70, %s73
    %p82 = scmp.eq.s32.totalorder %s15, 1
    %p83 = por %p81, %p82
    %p84 = scmp.ne.s32.totalorder %s73, %s74
    %p85 = scmp.eq.s32.totalorder %s15, 0
    %p86 = por %p84, %p85
    %p87 = scmp.ne.s32.totalorder %s73, %s74
    %p88 = scmp.eq.s32.totalorder %s16, 1
    %p89 = por %p87, %p88
    %p91 = scmp.ne.s32.totalorder %s74, %s90
    %p92 = scmp.eq.s32.totalorder %s16, 0
    %p93 = por %p91, %p92
    %s95 = sadd.s32 %s94, 1
    %p98 = scmp.eq.s32.totalorder %s10, 1
    %p99 = scmp.ne.s32.totalorder %s94, %s96
    %p100 = scmp.eq.s32.totalorder %s10, 0
    %p101 = por %p99, %p100
    %p102 = scmp.ne.s32.totalorder %s94, %s96
    %p103 = scmp.eq.s32.totalorder %s15, 1
    %p104 = por %p102, %p103
    %p105 = scmp.ne.s32.totalorder %s96, %s97
    %p106 = scmp.eq.s32.totalorder %s15, 0
    %p107 = por %p105, %p106
    %p108 = scmp.ne.s32.totalorder %s96, %s97
    %p109 = scmp.eq.s32.totalorder %s16, 1
    %p110 = por %p108, %p109
    %p112 = scmp.ne.s32.totalorder %s97, %s111
    %p113 = scmp.eq.s32.totalorder %s16, 0
    %p114 = por %p112, %p113
    %s116 = sadd.s32 %s115, 1
    %p119 = scmp.eq.s32.totalorder %s10, 1
    %p120 = scmp.ne.s32.totalorder %s115, %s117
    %p121 = scmp.eq.s32.totalorder %s10, 0
    %p122 = por %p120, %p121
    %p123 = scmp.ne.s32.totalorder %s115, %s117
    %p124 = scmp.eq.s32.totalorder %s15, 1
    %p125 = por %p123, %p124
    %p126 = scmp.ne.s32.totalorder %s117, %s118
    %p127 = scmp.eq.s32.totalorder %s15, 0
    %p128 = por %p126, %p127
    %p129 = scmp.ne.s32.totalorder %s117, %s118
    %p130 = scmp.eq.s32.totalorder %s16, 1
    %p131 = por %p129, %p130
    %p133 = scmp.ne.s32.totalorder %s118, %s132
    %p134 = scmp.eq.s32.totalorder %s16, 0
    %p135 = por %p133, %p134
    %s136 = ssub.s32 %s17, %s29
    %s137 = ssub.s32 %s18, %s25
    %s138 = sor.u32 %s136, %s137
    %p139 = scmp.eq.s32.totalorder %s138, 0
    %s141 = sadd.s32 %s140, 1
    %s142 = scalar_select %p139, %s140, %s141
    %p145 = pneg %p139
    %p146 = scmp.eq.s32.totalorder %s10, 1
    %p147 = por %p145, %p146
    %p148 = scmp.ne.s32.totalorder %s140, %s143
    %p149 = scmp.eq.s32.totalorder %s10, 0
    %p150 = por %p148, %p149
    %p151 = scmp.ne.s32.totalorder %s140, %s143
    %p152 = scmp.eq.s32.totalorder %s15, 1
    %p153 = por %p151, %p152
    %p154 = scmp.ne.s32.totalorder %s143, %s144
    %p155 = scmp.eq.s32.totalorder %s15, 0
    %p156 = por %p154, %p155
    %p157 = scmp.ne.s32.totalorder %s143, %s144
    %p158 = scmp.eq.s32.totalorder %s16, 1
    %p159 = por %p157, %p158
    %p161 = scmp.ne.s32.totalorder %s144, %s160
    %p162 = scmp.eq.s32.totalorder %s16, 0
    %p163 = por %p161, %p162
    %p164 = scmp.le.s32.totalorder 1, %s10
    %p165 = scmp.lt.s32.totalorder %s10, 3
    %p166 = pnand %p164, %p165
    %p167 = pneg %p166
    // Predicated region
    $region9: #{_lambda_.1} parent=5 // pred_check
      _
    $region10: #{_lambda_.1} parent=5 // pred_check_branch
      %169 = sbr.rel (%p166) target = $region12
    $region11: #{_lambda_.1} parent=5 // pred_region
      %s170 = ssub.s32 %s10, 1
      // Predicated region
      $region13: #{_lambda_.1} parent=11 // pred_check
        %p171 = pneg %p107
      $region14: #{_lambda_.1} parent=11 // pred_check_branch
        %173 = sbr.rel (%p171) target = $region16
      $region15: #{_lambda_.1} parent=11 // pred_region
        _
      $region16: #{_lambda_.1} parent=11 // pred_fallthru
        _
      // Predicated region
      $region17: #{_lambda_.1} parent=11 // pred_check
        %p174 = pneg %p128
      $region18: #{_lambda_.1} parent=11 // pred_check_branch
        %176 = sbr.rel (%p174) target = $region20
      $region19: #{_lambda_.1} parent=11 // pred_region
        _
      $region20: #{_lambda_.1} parent=11 // pred_fallthru
        _
    $region12: #{_lambda_.1} parent=5 // pred_fallthru
      _
    %p177 = scmp.lt.s32.totalorder %s10, 2
    // Predicated region
    $region21: #{_lambda_.1} parent=5 // pred_check
      %p178 = pneg %p177
    $region22: #{_lambda_.1} parent=5 // pred_check_branch
      %180 = sbr.rel (%p178) target = $region24
    $region23: #{_lambda_.1} parent=5 // pred_region
      // Predicated region
      $region25: #{_lambda_.1} parent=23 // pred_check
        %p181 = pneg %p44
      $region26: #{_lambda_.1} parent=23 // pred_check_branch
        %183 = sbr.rel (%p181) target = $region28
      $region27: #{_lambda_.1} parent=23 // pred_region
        %s184 = smul.u32 32, %s18
        %p185 = scmp.lt.s32.totalorder %s17, 1
        %s186 = scalar_select %p185, %s17, 1
        %p187 = scmp.lt.s32.totalorder %s184, 31
        %s188 = scalar_select %p187, %s184, 31
        %s189 = smul.addr %s186, 32
        %s190 = sadd.s32 %s188, %s189
        %s191 = smul.addr %s190, 8
        %s192 = scalar_lea.vmem %s0, %s191
        %s193 = smul.u32 32, %s18
      $region28: #{_lambda_.1} parent=23 // pred_fallthru
        _
      // Predicated region
      $region29: #{_lambda_.1} parent=23 // pred_check
        %p194 = pneg %p80
      $region30: #{_lambda_.1} parent=23 // pred_check_branch
        %196 = sbr.rel (%p194) target = $region32
      $region31: #{_lambda_.1} parent=23 // pred_region
        %s197 = sadd.s32 %s18, 1
        %s198 = smul.u32 %s197, 16
        %p199 = scmp.lt.s32.totalorder %s198, 15
        %s200 = scalar_select %p199, %s198, 15
        %s201 = smul.u32 2, %s200
        %p202 = scmp.lt.s32.totalorder %s17, 1
        %s203 = scalar_select %p202, %s17, 1
        %p204 = scmp.lt.s32.totalorder %s201, 31
        %s205 = scalar_select %p204, %s201, 31
        %s206 = smul.addr %s203, 32
        %s207 = sadd.s32 %s205, %s206
        %s208 = smul.addr %s207, 8
        %s209 = scalar_lea.vmem %s1, %s208
        %s210 = sadd.s32 %s18, 1
        %s211 = smul.u32 %s210, 16
        %p212 = scmp.lt.s32.totalorder %s211, 15
        %s213 = scalar_select %p212, %s211, 15
        %s214 = smul.u32 2, %s213
      $region32: #{_lambda_.1} parent=23 // pred_fallthru
        _
    $region24: #{_lambda_.1} parent=5 // pred_fallthru
      _
    %p215 = scmp.le.s32.totalorder 1, %s10
    %p216 = scmp.lt.s32.totalorder %s10, 3
    %p217 = pnand %p215, %p216
    %p218 = pneg %p217
    // Predicated region
    $region33: #{_lambda_.1} parent=5 // pred_check
      _
    $region34: #{_lambda_.1} parent=5 // pred_check_branch
      %220 = sbr.rel (%p217) target = $region36
    $region35: #{_lambda_.1} parent=5 // pred_region
      %s221 = ssub.s32 %s10, 1
      %s222 = smul.u32 32, %s20
      %p223 = scmp.lt.s32.totalorder %s19, 1
      %s224 = scalar_select %p223, %s19, 1
      %p225 = scmp.lt.s32.totalorder %s222, 31
      %s226 = scalar_select %p225, %s222, 31
      %s227 = smul.addr %s224, 32
      %s228 = sadd.s32 %s226, %s227
      %s229 = smul.addr %s228, 8
      %s230 = scalar_lea.vmem %s0, %s229
      %p231 = pneg %p50
      %p232 = pneg %p47
      %s233 = sadd.s32 %s20, 1
      %s234 = smul.u32 %s233, 16
      %p235 = scmp.lt.s32.totalorder %s234, 15
      %s236 = scalar_select %p235, %s234, 15
      %s237 = smul.u32 2, %s236
      %p238 = scmp.lt.s32.totalorder %s19, 1
      %s239 = scalar_select %p238, %s19, 1
      %p240 = scmp.lt.s32.totalorder %s237, 31
      %s241 = scalar_select %p240, %s237, 31
      %s242 = smul.addr %s239, 32
      %s243 = sadd.s32 %s241, %s242
      %s244 = smul.addr %s243, 8
      %s245 = scalar_lea.vmem %s1, %s244
      %p246 = pneg %p86
      %p247 = pneg %p83
      %p248 = pneg %p107
      %p249 = pneg %p104
      %p250 = pneg %p128
      %p251 = pneg %p125
      %p252 = pneg %p156
      %p253 = pneg %p153
      %s254 = smul.u32 2, %s20
      %p255 = scmp.lt.s32.totalorder %s19, 1
      %s256 = scalar_select %p255, %s19, 1
      %p257 = scmp.lt.s32.totalorder %s254, 1
      %s258 = scalar_select %p257, %s254, 1
      %s259 = smul.addr %s256, 4
      %s260 = sadd.s32 %s258, %s259
      %s261 = smul.addr %s260, 8
      %s262 = scalar_lea.vmem %s4, %s261
      %s263 = smul.u32 32, %s20
      %p264 = scmp.lt.s32.totalorder %s19, 1
      %s265 = scalar_select %p264, %s19, 1
      %p266 = scmp.lt.s32.totalorder %s263, 31
      %s267 = scalar_select %p266, %s263, 31
      %s268 = smul.addr %s265, 32
      %s269 = sadd.s32 %s267, %s268
      %s270 = smul.addr %s269, 8
      %s271 = scalar_lea.vmem %s0, %s270
      %s272 = smul.u32 32, %s20
      %s273 = sadd.s32 %s20, 1
      %s274 = smul.u32 %s273, 16
      %p275 = scmp.lt.s32.totalorder %s274, 15
      %s276 = scalar_select %p275, %s274, 15
      %s277 = smul.u32 2, %s276
      %p278 = scmp.lt.s32.totalorder %s19, 1
      %s279 = scalar_select %p278, %s19, 1
      %p280 = scmp.lt.s32.totalorder %s277, 31
      %s281 = scalar_select %p280, %s277, 31
      %s282 = smul.addr %s279, 32
      %s283 = sadd.s32 %s281, %s282
      %s284 = smul.addr %s283, 8
      %s285 = scalar_lea.vmem %s1, %s284
      %s286 = sadd.s32 %s20, 1
      %s287 = smul.u32 %s286, 16
      %p288 = scmp.lt.s32.totalorder %s287, 15
      %s289 = scalar_select %p288, %s287, 15
      %s290 = smul.u32 2, %s289
      %s291 = smul.u32 2, %s20
      %p292 = scmp.lt.s32.totalorder %s19, 1
      %s293 = scalar_select %p292, %s19, 1
      %p294 = scmp.lt.s32.totalorder %s291, 1
      %s295 = scalar_select %p294, %s291, 1
      %s296 = smul.addr %s293, 4
      %s297 = sadd.s32 %s295, %s296
      %s298 = smul.addr %s297, 8
      %s299 = scalar_lea.vmem %s4, %s298
      %s300 = smul.u32 2, %s20
      %v301 = vld [vmem:[%s271] sm:$0xff]
      %v302 = vld [vmem:[%s271 + $0x8] sm:$0xff]
      %v303 = vld [vmem:[%s271 + $0x10] sm:$0xff]
      %v304 = vld [vmem:[%s271 + $0x18] sm:$0xff]
      %v305 = vld [vmem:[%s271 + $0x20] sm:$0xff]
      %v306 = vld [vmem:[%s271 + $0x28] sm:$0xff]
      %v307 = vld [vmem:[%s271 + $0x30] sm:$0xff]
      %v308 = vld [vmem:[%s271 + $0x38] sm:$0xff]
      %v309 = vld [vmem:[%s271 + $0x40] sm:$0xff]
      %v310 = vld [vmem:[%s271 + $0x48] sm:$0xff]
      %v311 = vld [vmem:[%s271 + $0x50] sm:$0xff]
      %v312 = vld [vmem:[%s271 + $0x58] sm:$0xff]
      %v313 = vld [vmem:[%s271 + $0x60] sm:$0xff]
      %v314 = vld [vmem:[%s271 + $0x68] sm:$0xff]
      %v315 = vld [vmem:[%s271 + $0x70] sm:$0xff]
      %v316 = vld [vmem:[%s271 + $0x78] sm:$0xff]
      %v317 = vld [vmem:[%s271 + $0x80] sm:$0xff]
      %v318 = vld [vmem:[%s271 + $0x88] sm:$0xff]
      %v319 = vld [vmem:[%s271 + $0x90] sm:$0xff]
      %v320 = vld [vmem:[%s271 + $0x98] sm:$0xff]
      %v321 = vld [vmem:[%s271 + $0xa0] sm:$0xff]
      %v322 = vld [vmem:[%s271 + $0xa8] sm:$0xff]
      %v323 = vld [vmem:[%s271 + $0xb0] sm:$0xff]
      %v324 = vld [vmem:[%s271 + $0xb8] sm:$0xff]
      %v325 = vld [vmem:[%s271 + $0xc0] sm:$0xff]
      %v326 = vld [vmem:[%s271 + $0xc8] sm:$0xff]
      %v327 = vld [vmem:[%s271 + $0xd0] sm:$0xff]
      %v328 = vld [vmem:[%s271 + $0xd8] sm:$0xff]
      %v329 = vld [vmem:[%s271 + $0xe0] sm:$0xff]
      %v330 = vld [vmem:[%s271 + $0xe8] sm:$0xff]
      %v331 = vld [vmem:[%s271 + $0xf0] sm:$0xff]
      %v332 = vld [vmem:[%s271 + $0xf8] sm:$0xff]
      %v333 = vld [vmem:[%s285] sm:$0xff]
      %v334 = vld [vmem:[%s285 + $0x8] sm:$0xff]
      %s335 = sadd.s32 %s20, 1
      %p336 = scmp.lt.s32.totalorder %s335, 1
      %s337 = scalar_select %p336, 1, 0
      %s338 = scvt.s32.f32 %s337
      %v339 = vstv %s338
      %v340 = vmul.f32 %v333, %v339
      %v341 = vmul.f32 %v334, %v339
      %v342 = vld [vmem:[%s2] sm:$0xff]
      %v343 = vld [vmem:[%s2 + $0x8] sm:$0xff]
      %v344 = vld [vmem:[%s2 + $0x10] sm:$0xff]
      %v345 = vld [vmem:[%s2 + $0x18] sm:$0xff]
      %v346 = vld [vmem:[%s2 + $0x20] sm:$0xff]
      %v347 = vld [vmem:[%s2 + $0x28] sm:$0xff]
      %v348 = vld [vmem:[%s2 + $0x30] sm:$0xff]
      %v349 = vld [vmem:[%s2 + $0x38] sm:$0xff]
      %vm350 = vcmask 261120
      %v352 = vsel %vm350, %v342, 0
      %v355 = vsel %vm350, %v343, 0
      %v358 = vsel %vm350, %v344, 0
      %v361 = vsel %vm350, %v345, 0
      %v364 = vsel %vm350, %v346, 0
      %v367 = vsel %vm350, %v347, 0
      %v370 = vsel %vm350, %v348, 0
      %v373 = vsel %vm350, %v349, 0
      %v376 = vsel %vm350, %v301, 0
      %v379 = vsel %vm350, %v302, 0
      %v382 = vsel %vm350, %v303, 0
      %v385 = vsel %vm350, %v304, 0
      %v388 = vsel %vm350, %v305, 0
      %v391 = vsel %vm350, %v306, 0
      %v394 = vsel %vm350, %v307, 0
      %v397 = vsel %vm350, %v308, 0
      %v400 = vsel %vm350, %v309, 0
      %v403 = vsel %vm350, %v310, 0
      %v406 = vsel %vm350, %v311, 0
      %v409 = vsel %vm350, %v312, 0
      %v412 = vsel %vm350, %v313, 0
      %v415 = vsel %vm350, %v314, 0
      %v418 = vsel %vm350, %v315, 0
      %v421 = vsel %vm350, %v316, 0
      %v424 = vsel %vm350, %v317, 0
      %v427 = vsel %vm350, %v318, 0
      %v430 = vsel %vm350, %v319, 0
      %v433 = vsel %vm350, %v320, 0
      %v436 = vsel %vm350, %v321, 0
      %v439 = vsel %vm350, %v322, 0
      %v442 = vsel %vm350, %v323, 0
      %v445 = vsel %vm350, %v324, 0
      %v448 = vsel %vm350, %v325, 0
      %v451 = vsel %vm350, %v326, 0
      %v454 = vsel %vm350, %v327, 0
      %v457 = vsel %vm350, %v328, 0
      %v460 = vsel %vm350, %v329, 0
      %v463 = vsel %vm350, %v330, 0
      %v466 = vsel %vm350, %v331, 0
      %v469 = vsel %vm350, %v332, 0
      %v472 = vsel %vm350, %v340, 0
      %v475 = vsel %vm350, %v341, 0
      %v478 = vsel %vm350, 0.0, 0
      %480 = vmatprep.subr.mxu0 0.0
      %481 = vmatpush1.xpose.msra.mxu0 %v421
      %482 = vmatprep.subr.mxu0 0.0
      %483 = vmatpush1.xpose.msra.mxu0 %v418
      %484 = vmatprep.subr.mxu0 0.0
      %485 = vmatpush1.xpose.msra.mxu0 %v415
      %486 = vmatprep.subr.mxu0 0.0
      %487 = vmatpush1.xpose.msra.mxu0 %v412
      %488 = vmatprep.subr.mxu0 0.0
      %489 = vmatpush1.xpose.msra.mxu0 %v409
      %490 = vmatprep.subr.mxu0 0.0
      %491 = vmatpush1.xpose.msra.mxu0 %v406
      %492 = vmatprep.subr.mxu0 0.0
      %493 = vmatpush1.xpose.msra.mxu0 %v403
      %494 = vmatprep.subr.mxu0 0.0
      %495 = vmatpush1.xpose.msra.mxu0 %v400
      %496 = vmatprep.subr.mxu0 0.0
      %497 = vmatpush1.xpose.msra.mxu0 %v397
      %498 = vmatprep.subr.mxu0 0.0
      %499 = vmatpush1.xpose.msra.mxu0 %v394
      %500 = vmatprep.subr.mxu0 0.0
      %501 = vmatpush1.xpose.msra.mxu0 %v391
      %502 = vmatprep.subr.mxu0 0.0
      %503 = vmatpush1.xpose.msra.mxu0 %v388
      %504 = vmatprep.subr.mxu0 0.0
      %505 = vmatpush1.xpose.msra.mxu0 %v385
      %506 = vmatprep.subr.mxu0 0.0
      %507 = vmatpush1.xpose.msra.mxu0 %v382
      %508 = vmatprep.subr.mxu0 0.0
      %509 = vmatpush1.xpose.msra.mxu0 %v379
      %510 = vmatprep.subr.mxu0 0.0
      %511 = vmatpush1.xpose.msra.mxu0 %v376
      %512 = vmatprep.subr.mxu0 0.0
      %513 = vmatpush2.xpose.msra.mxu0 %v469
      %514 = vmatprep.subr.mxu0 0.0
      %515 = vmatpush2.xpose.msra.mxu0 %v466
      %516 = vmatprep.subr.mxu0 0.0
      %517 = vmatpush2.xpose.msra.mxu0 %v463
      %518 = vmatprep.subr.mxu0 0.0
      %519 = vmatpush2.xpose.msra.mxu0 %v460
      %520 = vmatprep.subr.mxu0 0.0
      %521 = vmatpush2.xpose.msra.mxu0 %v457
      %522 = vmatprep.subr.mxu0 0.0
      %523 = vmatpush2.xpose.msra.mxu0 %v454
      %524 = vmatprep.subr.mxu0 0.0
      %525 = vmatpush2.xpose.msra.mxu0 %v451
      %526 = vmatprep.subr.mxu0 0.0
      %527 = vmatpush2.xpose.msra.mxu0 %v448
      %528 = vmatprep.subr.mxu0 0.0
      %529 = vmatpush2.xpose.msra.mxu0 %v445
      %530 = vmatprep.subr.mxu0 0.0
      %531 = vmatpush2.xpose.msra.mxu0 %v442
      %532 = vmatprep.subr.mxu0 0.0
      %533 = vmatpush2.xpose.msra.mxu0 %v439
      %534 = vmatprep.subr.mxu0 0.0
      %535 = vmatpush2.xpose.msra.mxu0 %v436
      %536 = vmatprep.subr.mxu0 0.0
      %537 = vmatpush2.xpose.msra.mxu0 %v433
      %538 = vmatprep.subr.mxu0 0.0
      %539 = vmatpush2.xpose.msra.mxu0 %v430
      %540 = vmatprep.subr.mxu0 0.0
      %541 = vmatpush2.xpose.msra.mxu0 %v427
      %542 = vmatprep.subr.mxu0 0.0
      %543 = vmatpush2.xpose.msra.mxu0 %v424
      %544 = vmatprep.mubr.f32.mxu0 0.0
      %545 = vmatmul.mubr.f32.gmra.mxu0 %v352
      %v546 = vpop.f32.mrf.mxu0
      %v547 = vadd.f32 0.0, %v546
      %v548 = vpop.f32.mrf.mxu0
      %v549 = vadd.f32 0.0, %v548
      %550 = vmatprep.mubr.f32.mxu0 0.0
      %551 = vmatmul.mubr.f32.gmra.mxu0 %v355
      %v552 = vpop.f32.mrf.mxu0
      %v553 = vadd.f32 0.0, %v552
      %v554 = vpop.f32.mrf.mxu0
      %v555 = vadd.f32 0.0, %v554
      %556 = vmatprep.mubr.f32.mxu0 0.0
      %557 = vmatmul.mubr.f32.gmra.mxu0 %v358
      %v558 = vpop.f32.mrf.mxu0
      %v559 = vadd.f32 0.0, %v558
      %v560 = vpop.f32.mrf.mxu0
      %v561 = vadd.f32 0.0, %v560
      %562 = vmatprep.mubr.f32.mxu0 0.0
      %563 = vmatmul.mubr.f32.gmra.mxu0 %v361
      %v564 = vpop.f32.mrf.mxu0
      %v565 = vadd.f32 0.0, %v564
      %v566 = vpop.f32.mrf.mxu0
      %v567 = vadd.f32 0.0, %v566
      %568 = vmatprep.mubr.f32.mxu0 0.0
      %569 = vmatmul.mubr.f32.gmra.mxu0 %v364
      %v570 = vpop.f32.mrf.mxu0
      %v571 = vadd.f32 0.0, %v570
      %v572 = vpop.f32.mrf.mxu0
      %v573 = vadd.f32 0.0, %v572
      %574 = vmatprep.mubr.f32.mxu0 0.0
      %575 = vmatmul.mubr.f32.gmra.mxu0 %v367
      %v576 = vpop.f32.mrf.mxu0
      %v577 = vadd.f32 0.0, %v576
      %v578 = vpop.f32.mrf.mxu0
      %v579 = vadd.f32 0.0, %v578
      %580 = vmatprep.mubr.f32.mxu0 0.0
      %581 = vmatmul.mubr.f32.gmra.mxu0 %v370
      %v582 = vpop.f32.mrf.mxu0
      %v583 = vadd.f32 0.0, %v582
      %v584 = vpop.f32.mrf.mxu0
      %v585 = vadd.f32 0.0, %v584
      %586 = vmatprep.mubr.f32.mxu0 0.0
      %587 = vmatmul.mubr.f32.gmra.mxu0 %v373
      %v588 = vpop.f32.mrf.mxu0
      %v589 = vadd.f32 0.0, %v588
      %v590 = vpop.f32.mrf.mxu0
      %v591 = vadd.f32 0.0, %v590
      %592 = vdwg.mxu0
      %593 = vmatprep.subr.mxu0 0.0
      %594 = vmatpush1.xpose.msra.mxu0 %v478
      %595 = vmatprep.subr.mxu0 0.0
      %596 = vmatpush1.xpose.msra.mxu0 %v478
      %597 = vmatprep.subr.mxu0 0.0
      %598 = vmatpush1.xpose.msra.mxu0 %v478
      %599 = vmatprep.subr.mxu0 0.0
      %600 = vmatpush1.xpose.msra.mxu0 %v478
      %601 = vmatprep.subr.mxu0 0.0
      %602 = vmatpush1.xpose.msra.mxu0 %v478
      %603 = vmatprep.subr.mxu0 0.0
      %604 = vmatpush1.xpose.msra.mxu0 %v478
      %605 = vmatprep.subr.mxu0 0.0
      %606 = vmatpush1.xpose.msra.mxu0 %v478
      %607 = vmatprep.subr.mxu0 0.0
      %608 = vmatpush1.xpose.msra.mxu0 %v478
      %609 = vmatprep.subr.mxu0 0.0
      %610 = vmatpush1.xpose.msra.mxu0 %v478
      %611 = vmatprep.subr.mxu0 0.0
      %612 = vmatpush1.xpose.msra.mxu0 %v478
      %613 = vmatprep.subr.mxu0 0.0
      %614 = vmatpush1.xpose.msra.mxu0 %v478
      %615 = vmatprep.subr.mxu0 0.0
      %616 = vmatpush1.xpose.msra.mxu0 %v478
      %617 = vmatprep.subr.mxu0 0.0
      %618 = vmatpush1.xpose.msra.mxu0 %v478
      %619 = vmatprep.subr.mxu0 0.0
      %620 = vmatpush1.xpose.msra.mxu0 %v478
      %621 = vmatprep.subr.mxu0 0.0
      %622 = vmatpush1.xpose.msra.mxu0 %v475
      %623 = vmatprep.subr.mxu0 0.0
      %624 = vmatpush1.xpose.msra.mxu0 %v472
      %625 = vmatprep.subr.mxu0 0.0
      %626 = vmatpush2.xpose.msra.mxu0 0.0
      %627 = vmatprep.subr.mxu0 0.0
      %628 = vmatpush2.xpose.msra.mxu0 0.0
      %629 = vmatprep.subr.mxu0 0.0
      %630 = vmatpush2.xpose.msra.mxu0 0.0
      %631 = vmatprep.subr.mxu0 0.0
      %632 = vmatpush2.xpose.msra.mxu0 0.0
      %633 = vmatprep.subr.mxu0 0.0
      %634 = vmatpush2.xpose.msra.mxu0 0.0
      %635 = vmatprep.subr.mxu0 0.0
      %636 = vmatpush2.xpose.msra.mxu0 0.0
      %637 = vmatprep.subr.mxu0 0.0
      %638 = vmatpush2.xpose.msra.mxu0 0.0
      %639 = vmatprep.subr.mxu0 0.0
      %640 = vmatpush2.xpose.msra.mxu0 0.0
      %641 = vmatprep.subr.mxu0 0.0
      %642 = vmatpush2.xpose.msra.mxu0 0.0
      %643 = vmatprep.subr.mxu0 0.0
      %644 = vmatpush2.xpose.msra.mxu0 0.0
      %645 = vmatprep.subr.mxu0 0.0
      %646 = vmatpush2.xpose.msra.mxu0 0.0
      %647 = vmatprep.subr.mxu0 0.0
      %648 = vmatpush2.xpose.msra.mxu0 0.0
      %649 = vmatprep.subr.mxu0 0.0
      %650 = vmatpush2.xpose.msra.mxu0 0.0
      %651 = vmatprep.subr.mxu0 0.0
      %652 = vmatpush2.xpose.msra.mxu0 0.0
      %653 = vmatprep.subr.mxu0 0.0
      %654 = vmatpush2.xpose.msra.mxu0 0.0
      %655 = vmatprep.subr.mxu0 0.0
      %656 = vmatpush2.xpose.msra.mxu0 0.0
      %657 = vmatprep.mubr.f32.mxu0 0.0
      %658 = vmatmul.mubr.f32.gmra.mxu0 %v352
      %v659 = vpop.f32.mrf.mxu0
      %v660 = vpop.f32.mrf.mxu0
      %661 = vmatprep.mubr.f32.mxu0 0.0
      %662 = vmatmul.mubr.f32.gmra.mxu0 %v355
      %v663 = vpop.f32.mrf.mxu0
      %v664 = vpop.f32.mrf.mxu0
      %665 = vmatprep.mubr.f32.mxu0 0.0
      %666 = vmatmul.mubr.f32.gmra.mxu0 %v358
      %v667 = vpop.f32.mrf.mxu0
      %v668 = vadd.f32 0.0, %v667
      %v669 = vpop.f32.mrf.mxu0
      %670 = vmatprep.mubr.f32.mxu0 0.0
      %671 = vmatmul.mubr.f32.gmra.mxu0 %v361
      %v672 = vpop.f32.mrf.mxu0
      %v673 = vadd.f32 0.0, %v672
      %v674 = vpop.f32.mrf.mxu0
      %675 = vmatprep.mubr.f32.mxu0 0.0
      %676 = vmatmul.mubr.f32.gmra.mxu0 %v364
      %v677 = vpop.f32.mrf.mxu0
      %v678 = vadd.f32 0.0, %v677
      %v679 = vpop.f32.mrf.mxu0
      %680 = vmatprep.mubr.f32.mxu0 0.0
      %681 = vmatmul.mubr.f32.gmra.mxu0 %v367
      %v682 = vpop.f32.mrf.mxu0
      %v683 = vadd.f32 0.0, %v682
      %v684 = vpop.f32.mrf.mxu0
      %685 = vmatprep.mubr.f32.mxu0 0.0
      %686 = vmatmul.mubr.f32.gmra.mxu0 %v370
      %v687 = vpop.f32.mrf.mxu0
      %v688 = vadd.f32 0.0, %v687
      %v689 = vpop.f32.mrf.mxu0
      %690 = vmatprep.mubr.f32.mxu0 0.0
      %691 = vmatmul.mubr.f32.gmra.mxu0 %v373
      %v692 = vpop.f32.mrf.mxu0
      %v693 = vadd.f32 0.0, %v692
      %v694 = vpop.f32.mrf.mxu0
      %695 = vdwg.mxu0
      %v696 = vlaneseq
      %v697 = vand.u32 %v696, 127
      %v698 = vadd.s32 %v697, 128
      %vm699 = vcmp.lt.s32.totalorder %v697, 0
      %v700 = vsub.s32 0, %v697
      %v701 = vsel %vm699, %v700, %v697
      %v702 = vshrl.u32 %v701, 4
      %v703 = vand.u32 %v701, 15
      %v704 = vsub.s32 0, %v703
      %v705 = vsel %vm699, %v704, %v703
      %vm706 = vcmp.lt.s32.totalorder %v698, 0
      %v707 = vsub.s32 0, %v698
      %v708 = vsel %vm706, %v707, %v698
      %v709 = vshrl.u32 %v708, 4
      %v710 = vand.u32 %v708, 15
      %v711 = vsub.s32 0, %v710
      %v712 = vsel %vm706, %v711, %v710
      %vm713 = vcmp.ne.s32.totalorder %v705, 0
      %vm714 = vcmp.ne.s32.totalorder %v712, 0
      %vm715 = vcmp.lt.s32.totalorder %v705, 0
      %vm716 = vcmp.lt.s32.totalorder %v712, 0
      %vm717 = vmand %vm715, %vm713
      %vm718 = vmand %vm716, %vm714
      %v719 = vadd.s32 %v705, 16
      %v720 = vadd.s32 %v712, 16
      %v721 = vsel %vm717, %v719, %v705
      %v722 = vsel %vm718, %v720, %v712
      %vm723 = vcmp.ne.s32.totalorder %v721, 15
      %vm724 = vcmp.ne.s32.totalorder %v722, 15
      %v725 = vsel %vm723, 1, 0
      %v726 = vsel %vm724, 1, 0
      %v727 = vcvt.s32.f32 %v725
      %v728 = vcvt.s32.f32 %v726
      %731 = vrot.lane.b32.xlu0 %v727, 1
      %v732 = vpop.permute.xlu0 %731
      %733 = vrot.lane.b32.xlu0 %v728, 1
      %v734 = vpop.permute.xlu0 %733
      %vm735 = vcmask 7168
      %v736 = vsel %vm735, %v732, %v734
      %v740 = vmul.f32 %v559, %v732
      %v741 = vmul.f32 %v561, %v736
      %v742 = vmul.f32 %v668, %v734
      %v743 = vmul.f32 %v565, %v732
      %v744 = vmul.f32 %v567, %v736
      %v745 = vmul.f32 %v673, %v734
      %752 = vrot.lane.b32.xlu0 %v740, 127
      %v753 = vpop.permute.xlu0 %752
      %754 = vrot.lane.b32.xlu0 %v741, 127
      %v755 = vpop.permute.xlu0 %754
      %756 = vrot.lane.b32.xlu0 %v742, 127
      %v757 = vpop.permute.xlu0 %756
      %758 = vrot.lane.b32.xlu0 %v743, 127
      %v759 = vpop.permute.xlu0 %758
      %760 = vrot.lane.b32.xlu0 %v744, 127
      %v761 = vpop.permute.xlu0 %760
      %762 = vrot.lane.b32.xlu0 %v745, 127
      %v763 = vpop.permute.xlu0 %762
      %vm764 = vcmask 1039360
      %v765 = vsel %vm764, %v753, %v755
      %v766 = vsel %vm764, %v755, %v757
      %v767 = vsel %vm764, %v759, %v761
      %v768 = vsel %vm764, %v761, %v763
      %v773 = vadd.f32 %v547, %v765
      %v774 = vadd.f32 %v549, %v766
      %v775 = vadd.f32 %v553, %v767
      %v776 = vadd.f32 %v555, %v768
      %783 = vrot.lane.b32.xlu0 %v571, 112
      %v784 = vpop.permute.xlu0 %783
      %785 = vrot.lane.b32.xlu0 %v573, 112
      %v786 = vpop.permute.xlu0 %785
      %787 = vrot.lane.b32.xlu0 %v678, 112
      %v788 = vpop.permute.xlu0 %787
      %789 = vrot.lane.b32.xlu0 %v577, 112
      %v790 = vpop.permute.xlu0 %789
      %791 = vrot.lane.b32.xlu0 %v579, 112
      %v792 = vpop.permute.xlu0 %791
      %793 = vrot.lane.b32.xlu0 %v683, 112
      %v794 = vpop.permute.xlu0 %793
      %vm795 = vcmask 916480
      %v796 = vsel %vm795, %v784, %v786
      %v797 = vsel %vm795, %v786, %v788
      %v798 = vsel %vm795, %v790, %v792
      %v799 = vsel %vm795, %v792, %v794
      %v804 = vadd.f32 %v773, %v796
      %v805 = vadd.f32 %v774, %v797
      %v806 = vadd.f32 %v775, %v798
      %v807 = vadd.f32 %v776, %v799
      %808 = vrot.lane.b32.xlu0 %v727, 17
      %v809 = vpop.permute.xlu0 %808
      %810 = vrot.lane.b32.xlu0 %v728, 17
      %v811 = vpop.permute.xlu0 %810
      %vm812 = vcmask 138240
      %v813 = vsel %vm812, %v809, %v811
      %v817 = vmul.f32 %v583, %v809
      %v818 = vmul.f32 %v585, %v813
      %v819 = vmul.f32 %v688, %v811
      %v820 = vmul.f32 %v589, %v809
      %v821 = vmul.f32 %v591, %v813
      %v822 = vmul.f32 %v693, %v811
      %829 = vrot.lane.b32.xlu0 %v817, 111
      %v830 = vpop.permute.xlu0 %829
      %831 = vrot.lane.b32.xlu0 %v818, 111
      %v832 = vpop.permute.xlu0 %831
      %833 = vrot.lane.b32.xlu0 %v819, 111
      %v834 = vpop.permute.xlu0 %833
      %835 = vrot.lane.b32.xlu0 %v820, 111
      %v836 = vpop.permute.xlu0 %835
      %837 = vrot.lane.b32.xlu0 %v821, 111
      %v838 = vpop.permute.xlu0 %837
      %839 = vrot.lane.b32.xlu0 %v822, 111
      %v840 = vpop.permute.xlu0 %839
      %vm841 = vcmask 908288
      %v842 = vsel %vm841, %v830, %v832
      %v843 = vsel %vm841, %v832, %v834
      %v844 = vsel %vm841, %v836, %v838
      %v845 = vsel %vm841, %v838, %v840
      %v850 = vadd.f32 %v804, %v842
      %v851 = vadd.f32 %v805, %v843
      %v852 = vadd.f32 %v806, %v844
      %v853 = vadd.f32 %v807, %v845
      %v854 = vld [vmem:[%s3] sm:$0xff]
      %v855 = vld [vmem:[%s3 + $0x8] sm:$0xff]
      %857 = vset.pattern.permute.xlu0 0
      %858 = vperm.xlu0 %857, %v854
      %v859 = vpop.permute.xlu0 %858
      %862 = vset.pattern.permute.xlu0 0
      %863 = vperm.xlu0 %862, %v855
      %v864 = vpop.permute.xlu0 %863
      %v866 = vadd.f32 %v850, %v859
      %v867 = vadd.f32 %v851, %v859
      %v868 = vadd.f32 %v852, %v864
      %v869 = vadd.f32 %v853, %v864
      %870 = vst [vmem:[%s299] sm:$0xff] %v866
      %871 = vst [vmem:[%s299 + $0x8] sm:$0xff] %v867
      %872 = vst [vmem:[%s299 + $0x10] sm:$0xff] %v868
      %873 = vst [vmem:[%s299 + $0x18] sm:$0xff] %v869
      %s874 = smul.u32 2, %s20
      %p875 = scmp.lt.s32.totalorder %s19, 1
      %s876 = scalar_select %p875, %s19, 1
      %p877 = scmp.lt.s32.totalorder %s874, 1
      %s878 = scalar_select %p877, %s874, 1
      %s879 = smul.addr %s876, 4
      %s880 = sadd.s32 %s878, %s879
      %s881 = smul.addr %s880, 8
      %s882 = scalar_lea.vmem %s4, %s881
      // Predicated region
      $region37: #{_lambda_.1} parent=35 // pred_check
        %p883 = pneg %p153
      $region38: #{_lambda_.1} parent=35 // pred_check_branch
        %885 = sbr.rel (%p883) target = $region40
      $region39: #{_lambda_.1} parent=35 // pred_region
        %s886 = smul.u32 2, %s20
      $region40: #{_lambda_.1} parent=35 // pred_fallthru
        _
    $region36: #{_lambda_.1} parent=5 // pred_fallthru
      _
    %p887 = scmp.le.s32.totalorder 2, %s10
    // Predicated region
    $region41: #{_lambda_.1} parent=5 // pred_check
      %p888 = pneg %p887
    $region42: #{_lambda_.1} parent=5 // pred_check_branch
      %890 = sbr.rel (%p888) target = $region44
    $region43: #{_lambda_.1} parent=5 // pred_region
      %s891 = ssub.s32 %s10, 2
      // Predicated region
      $region45: #{_lambda_.1} parent=43 // pred_check
        %p892 = pneg %p159
      $region46: #{_lambda_.1} parent=43 // pred_check_branch
        %894 = sbr.rel (%p892) target = $region48
      $region47: #{_lambda_.1} parent=43 // pred_region
        %s895 = smul.u32 2, %s22
        %p896 = scmp.lt.s32.totalorder %s21, 1
        %s897 = scalar_select %p896, %s21, 1
        %p898 = scmp.lt.s32.totalorder %s895, 1
        %s899 = scalar_select %p898, %s895, 1
        %s900 = smul.addr %s897, 4
        %s901 = sadd.s32 %s899, %s900
        %s902 = smul.addr %s901, 8
        %s903 = scalar_lea.vmem %s4, %s902
      $region48: #{_lambda_.1} parent=43 // pred_fallthru
        _
    $region44: #{_lambda_.1} parent=5 // pred_fallthru
      _
  $region6: #{_lambda_.1} parent=0 // loop_footer
    %s14 = sadd.s32 1, %s10
  $region7: #{_lambda_.1} parent=0 // loop_footer_branch
    %9 = sbr.rel target = $region3
  $region8: #{_lambda_.1} parent=0 // loop_exit
    _

</llo_original>
